<compile_context>
chip_gen: v5e
topology: v5e:2x2
jax: 0.10.0
libtpu: 0.0.40
codegen_flags: <defaults>
</compile_context>

<pallas_src>
import functools

import jax
import jax.numpy as jnp
from jax import lax
from jax.experimental import pallas as pl
from jax.experimental.pallas import tpu as pltpu

_SUBLANE = 8
_MAX_TILE_B = 512   # batch rows per grid step (review: 256-512 sweet spot)
_MOD_PAD = 8        # gate rows padded to one full sublane tile


def _layer_sizes(dim):
    # Per-modality Linear chain: D -> D/2 -> D/2 -> D/4 -> D/4 -> D/8 -> 1
    return [dim, dim // 2, dim // 2, dim // 4, dim // 4, dim // 8, 1]


# --------------------------------------------------------------------------
# Kernel
# --------------------------------------------------------------------------
def _gates_kernel(x1_ref, x2_ref, x3_ref,
                  w1a_ref, w1b_ref, w1c_ref, b1_ref,
                  w2_ref, b2_ref, w3_ref, b3_ref,
                  w4_ref, b4_ref, w5_ref, b5_ref,
                  w6_ref, b6_ref,
                  out_ref):
    """One batch tile per grid step; all three modality gates at once."""
    f32 = jnp.float32

    # Layer 1: each modality input hits its own row-block of the fused weight.
    # Summing the three partial matmuls == concatenated-input matmul, without
    # any wrapper-side concat/pad copy of the inputs.
    h = (jnp.dot(x1_ref[...], w1a_ref[...], preferred_element_type=f32)
         + jnp.dot(x2_ref[...], w1b_ref[...], preferred_element_type=f32)
         + jnp.dot(x3_ref[...], w1c_ref[...], preferred_element_type=f32)
         + b1_ref[...])
    h = jnp.maximum(h, 0.0)

    # Layers 2..5: block-diagonal matmuls.  Off-diagonal zeros + ReLU(0)=0
    # keep the three gate MLPs exactly independent.
    for w_ref, b_ref in ((w2_ref, b2_ref), (w3_ref, b3_ref),
                         (w4_ref, b4_ref), (w5_ref, b5_ref)):
        h = jnp.dot(h, w_ref[...], preferred_element_type=f32) + b_ref[...]
        h = jnp.maximum(h, 0.0)

    # Final Linear(->1) per modality, batch-on-lanes: W6 is (8, D5) with one
    # modality's final weight per sublane row.  NT contraction over features
    # yields (8, TILE_B) so the store stays lane-dense and tiny.
    logits = lax.dot_general(w6_ref[...], h, (((1,), (1,)), ((), ())),
                             preferred_element_type=f32)
    z = logits + b6_ref[...]
    # Numerically safe sigmoid on the EUP (no inf intermediates).
    out_ref[...] = 0.5 * (jnp.tanh(0.5 * z) + 1.0)


def _run_fused(x1, x2, x3, packed, *, tile_b):
    b_pad = x1.shape[0]
    n_tiles = b_pad // tile_b

    def x_spec(d):
        return pl.BlockSpec((tile_b, d), lambda i: (i, 0))

    def full_spec(arr):
        # Full-extent block, constant index -> DMA'd once, resident in VMEM.
        return pl.BlockSpec(arr.shape, lambda i: (0, 0))

    in_specs = ([x_spec(x1.shape[1]), x_spec(x2.shape[1]), x_spec(x3.shape[1])]
                + [full_spec(p) for p in packed])
    out_spec = pl.BlockSpec((_MOD_PAD, tile_b), lambda i: (0, i))

    return pl.pallas_call(
        _gates_kernel,
        out_shape=jax.ShapeDtypeStruct((_MOD_PAD, b_pad), jnp.float32),
        grid=(n_tiles,),
        in_specs=in_specs,
        out_specs=out_spec,
        compiler_params=pltpu.CompilerParams(
            dimension_semantics=("parallel",)),
    )(x1, x2, x3, *packed)


@functools.partial(jax.jit, static_argnames=("b_pad", "tile_b"))
def _fused_forward(x1, x2, x3, packed, *, b_pad, tile_b):
    B = x1.shape[0]

    def prep(x):
        x = x.astype(jnp.float32)
        return x if b_pad == B else jnp.pad(x, ((0, b_pad - B), (0, 0)))

    out = _run_fused(prep(x1), prep(x2), prep(x3), packed, tile_b=tile_b)
    g = out[:3, :B]                                  # (3, B)
    return g[0, :, None], g[1, :, None], g[2, :, None]


# --------------------------------------------------------------------------
# Parameters
# --------------------------------------------------------------------------
def _init_gate_params(key, dim):
    """Per-modality unpadded params; weights (in, out), biases (out,)."""
    sizes = _layer_sizes(dim)
    params = []
    for i in range(6):
        fan_in, fan_out = sizes[i], sizes[i + 1]
        key, kw, kb = jax.random.split(key, 3)
        bound = 1.0 / float(fan_in) ** 0.5
        w = jax.random.uniform(kw, (fan_in, fan_out), jnp.float32, -bound, bound)
        b = jax.random.uniform(kb, (fan_out,), jnp.float32, -bound, bound)
        params.append((w, b))
    return params


def _pack_block_diagonal(per_mod, dims):
    """Pack the 3 modalities' gate MLPs into one block-diagonal MLP."""
    n_mod = len(dims)
    sizes = [_layer_sizes(d) for d in dims]
    D = [sum(s[l] for s in sizes) for l in range(7)]   # fused widths per level

    packed = []

    # Layer 1: per-modality row blocks over the shared fused output width D[1].
    b1 = jnp.zeros((1, D[1]), jnp.float32)
    w1_blocks = []
    off_out = 0
    for m in range(n_mod):
        w, b = per_mod[m][0]
        W = jnp.zeros((sizes[m][0], D[1]), jnp.float32)
        W = W.at[:, off_out:off_out + w.shape[1]].set(w)
        b1 = b1.at[0, off_out:off_out + b.shape[0]].set(b)
        w1_blocks.append(W)
        off_out += w.shape[1]
    packed.extend(w1_blocks)
    packed.append(b1)

    # Layers 2..5: block-diagonal weights + concatenated biases.
    for l in range(1, 5):
        W = jnp.zeros((D[l], D[l + 1]), jnp.float32)
        Bv = jnp.zeros((1, D[l + 1]), jnp.float32)
        off_in = off_out = 0
        for m in range(n_mod):
            w, b = per_mod[m][l]
            W = W.at[off_in:off_in + w.shape[0],
                     off_out:off_out + w.shape[1]].set(w)
            Bv = Bv.at[0, off_out:off_out + b.shape[0]].set(b)
            off_in += w.shape[0]
            off_out += w.shape[1]
        packed.append(W)
        packed.append(Bv)

    # Final layer (-> 1 per modality): one row per modality, padded to 8 rows.
    W6 = jnp.zeros((_MOD_PAD, D[5]), jnp.float32)
    b6 = jnp.zeros((_MOD_PAD, 1), jnp.float32)
    off_in = 0
    for m in range(n_mod):
        w, b = per_mod[m][5]
        W6 = W6.at[m, off_in:off_in + w.shape[0]].set(w[:, 0])
        b6 = b6.at[m, 0].set(b[0])
        off_in += w.shape[0]
    packed.append(W6)
    packed.append(b6)
    return tuple(packed)


def _choose_tiling(B):
    """Bucket b_pad to powers of two (caps recompiles); tile up to 512 rows."""
    b_pad = max(_SUBLANE, 1 << (max(B, 1) - 1).bit_length())
    tile_b = min(b_pad, _MAX_TILE_B)
    return b_pad, tile_b


class GatingMechanismPallas:
    def __init__(self, chem_ecfp_dim, chem_graph_dim, prot_graph_dim, key):
        k1, k2, k3 = jax.random.split(key, 3)
        self.dims = (chem_ecfp_dim, chem_graph_dim, prot_graph_dim)
        self.params_ecfp = _init_gate_params(k1, chem_ecfp_dim)
        self.params_cg = _init_gate_params(k2, chem_graph_dim)
        self.params_pg = _init_gate_params(k3, prot_graph_dim)
        self.packed = _pack_block_diagonal(
            [self.params_ecfp, self.params_cg, self.params_pg], self.dims)

    def __call__(self, chem_ecfp, chem_graph, prot_graph):
        b_pad, tile_b = _choose_tiling(chem_ecfp.shape[0])
        return _fused_forward(chem_ecfp, chem_graph, prot_graph, self.packed,
                              b_pad=b_pad, tile_b=tile_b)


# --------------------------------------------------------------------------
# Pure-JAX reference (unfused, unpadded params)
# --------------------------------------------------------------------------
def _reference_gate(x, params):
    h = x.astype(jnp.float32)
    for i, (w, b) in enumerate(params):
        h = jnp.dot(h, w, precision=lax.Precision.HIGHEST) + b
        if i < 5:
            h = jnp.maximum(h, 0.0)
    return 1.0 / (1.0 + jnp.exp(-h))


if __name__ == "__main__":
    key = jax.random.PRNGKey(0)
    k_params, k_e, k_c, k_p = jax.random.split(key, 4)

    batch = 2
    chem_ecfp_dim = 32
    chem_graph_dim = 32
    prot_graph_dim = 64

    model = GatingMechanismPallas(chem_ecfp_dim, chem_graph_dim,
                                  prot_graph_dim, k_params)

    chem_ecfp = jax.random.normal(k_e, (batch, chem_ecfp_dim), jnp.float32)
    chem_graph = jax.random.normal(k_c, (batch, chem_graph_dim), jnp.float32)
    prot_graph = jax.random.normal(k_p, (batch, prot_graph_dim), jnp.float32)

    g_e, g_c, g_p = model(chem_ecfp, chem_graph, prot_graph)
    jax.block_until_ready((g_e, g_c, g_p))

    # Correctness check against the pure-JAX reference.
    r_e = _reference_gate(chem_ecfp, model.params_ecfp)
    r_c = _reference_gate(chem_graph, model.params_cg)
    r_p = _reference_gate(prot_graph, model.params_pg)

    assert g_e.shape == (batch, 1) and g_c.shape == (batch, 1) and g_p.shape == (batch, 1)
    assert jnp.allclose(g_e, r_e, atol=1e-4)
    assert jnp.allclose(g_c, r_c, atol=1e-4)
    assert jnp.allclose(g_p, r_p, atol=1e-4)

    print("KERNEL_OK")
</pallas_src>

<mosaic_0001>
module attributes {stable_mosaic.version = 11 : i64} {
  func.func @_gates_kernel(%arg0: i32, %arg1: memref<8x32xf32, #tpu.memory_space<vmem>>, %arg2: memref<8x32xf32, #tpu.memory_space<vmem>>, %arg3: memref<8x64xf32, #tpu.memory_space<vmem>>, %arg4: memref<32x64xf32, #tpu.memory_space<vmem>>, %arg5: memref<32x64xf32, #tpu.memory_space<vmem>>, %arg6: memref<64x64xf32, #tpu.memory_space<vmem>>, %arg7: memref<1x64xf32, #tpu.memory_space<vmem>>, %arg8: memref<64x64xf32, #tpu.memory_space<vmem>>, %arg9: memref<1x64xf32, #tpu.memory_space<vmem>>, %arg10: memref<64x32xf32, #tpu.memory_space<vmem>>, %arg11: memref<1x32xf32, #tpu.memory_space<vmem>>, %arg12: memref<32x32xf32, #tpu.memory_space<vmem>>, %arg13: memref<1x32xf32, #tpu.memory_space<vmem>>, %arg14: memref<32x16xf32, #tpu.memory_space<vmem>>, %arg15: memref<1x16xf32, #tpu.memory_space<vmem>>, %arg16: memref<8x16xf32, #tpu.memory_space<vmem>>, %arg17: memref<8x1xf32, #tpu.memory_space<vmem>>, %arg18: memref<8x8xf32, #tpu.memory_space<vmem>>) attributes {dimension_semantics = [#tpu.dimension_semantics<parallel>], iteration_bounds = array<i64: 1>, scalar_prefetch = 0 : i64, scratch_operands = 0 : i64, tpu.core_type = #tpu.core_type<tc>, window_params = [{transform_indices = @transform_0, window_bounds = array<i64: 8, 32>}, {transform_indices = @transform_1, window_bounds = array<i64: 8, 32>}, {transform_indices = @transform_2, window_bounds = array<i64: 8, 64>}, {pipeline_mode = #tpu.pipeline_mode<synchronous>, transform_indices = @transform_3, window_bounds = array<i64: 32, 64>}, {pipeline_mode = #tpu.pipeline_mode<synchronous>, transform_indices = @transform_4, window_bounds = array<i64: 32, 64>}, {pipeline_mode = #tpu.pipeline_mode<synchronous>, transform_indices = @transform_5, window_bounds = array<i64: 64, 64>}, {pipeline_mode = #tpu.pipeline_mode<synchronous>, transform_indices = @transform_6, window_bounds = array<i64: 1, 64>}, {pipeline_mode = #tpu.pipeline_mode<synchronous>, transform_indices = @transform_7, window_bounds = array<i64: 64, 64>}, {pipeline_mode = #tpu.pipeline_mode<synchronous>, transform_indices = @transform_8, window_bounds = array<i64: 1, 64>}, {pipeline_mode = #tpu.pipeline_mode<synchronous>, transform_indices = @transform_9, window_bounds = array<i64: 64, 32>}, {pipeline_mode = #tpu.pipeline_mode<synchronous>, transform_indices = @transform_10, window_bounds = array<i64: 1, 32>}, {pipeline_mode = #tpu.pipeline_mode<synchronous>, transform_indices = @transform_11, window_bounds = array<i64: 32, 32>}, {pipeline_mode = #tpu.pipeline_mode<synchronous>, transform_indices = @transform_12, window_bounds = array<i64: 1, 32>}, {pipeline_mode = #tpu.pipeline_mode<synchronous>, transform_indices = @transform_13, window_bounds = array<i64: 32, 16>}, {pipeline_mode = #tpu.pipeline_mode<synchronous>, transform_indices = @transform_14, window_bounds = array<i64: 1, 16>}, {pipeline_mode = #tpu.pipeline_mode<synchronous>, transform_indices = @transform_15, window_bounds = array<i64: 8, 16>}, {pipeline_mode = #tpu.pipeline_mode<synchronous>, transform_indices = @transform_16, window_bounds = array<i64: 8, 1>}, {transform_indices = @transform_17, window_bounds = array<i64: 8, 8>}]} {
    %c0 = arith.constant 0 : index
    %c0_0 = arith.constant 0 : index
    %0 = vector.load %arg1[%c0, %c0_0] : memref<8x32xf32, #tpu.memory_space<vmem>>, vector<8x32xf32>
    %c0_1 = arith.constant 0 : index
    %c0_2 = arith.constant 0 : index
    %1 = vector.load %arg4[%c0_1, %c0_2] : memref<32x64xf32, #tpu.memory_space<vmem>>, vector<32x64xf32>
    %cst = arith.constant dense<0.000000e+00> : vector<8x64xf32>
    %2 = tpu.matmul %0, %1, %cst {dimension_numbers = #tpu.dot_dimension_numbers<[1], [0], [0], [1], [0, 0, 1, 1], [], []>} : vector<8x32xf32>, vector<32x64xf32>, vector<8x64xf32> -> vector<8x64xf32>
    %c0_3 = arith.constant 0 : index
    %c0_4 = arith.constant 0 : index
    %3 = vector.load %arg2[%c0_3, %c0_4] : memref<8x32xf32, #tpu.memory_space<vmem>>, vector<8x32xf32>
    %c0_5 = arith.constant 0 : index
    %c0_6 = arith.constant 0 : index
    %4 = vector.load %arg5[%c0_5, %c0_6] : memref<32x64xf32, #tpu.memory_space<vmem>>, vector<32x64xf32>
    %cst_7 = arith.constant dense<0.000000e+00> : vector<8x64xf32>
    %5 = tpu.matmul %3, %4, %cst_7 {dimension_numbers = #tpu.dot_dimension_numbers<[1], [0], [0], [1], [0, 0, 1, 1], [], []>} : vector<8x32xf32>, vector<32x64xf32>, vector<8x64xf32> -> vector<8x64xf32>
    %6 = arith.addf %2, %5 : vector<8x64xf32>
    %c0_8 = arith.constant 0 : index
    %c0_9 = arith.constant 0 : index
    %7 = vector.load %arg3[%c0_8, %c0_9] : memref<8x64xf32, #tpu.memory_space<vmem>>, vector<8x64xf32>
    %c0_10 = arith.constant 0 : index
    %c0_11 = arith.constant 0 : index
    %8 = vector.load %arg6[%c0_10, %c0_11] : memref<64x64xf32, #tpu.memory_space<vmem>>, vector<64x64xf32>
    %cst_12 = arith.constant dense<0.000000e+00> : vector<8x64xf32>
    %9 = tpu.matmul %7, %8, %cst_12 {dimension_numbers = #tpu.dot_dimension_numbers<[1], [0], [0], [1], [0, 0, 1, 1], [], []>} : vector<8x64xf32>, vector<64x64xf32>, vector<8x64xf32> -> vector<8x64xf32>
    %10 = arith.addf %6, %9 : vector<8x64xf32>
    %c0_13 = arith.constant 0 : index
    %c0_14 = arith.constant 0 : index
    %11 = vector.load %arg7[%c0_13, %c0_14] : memref<1x64xf32, #tpu.memory_space<vmem>>, vector<1x64xf32>
    %12 = vector.broadcast %11 : vector<1x64xf32> to vector<8x64xf32>
    %13 = arith.addf %10, %12 : vector<8x64xf32>
    %cst_15 = arith.constant 0.000000e+00 : f32
    %14 = vector.broadcast %cst_15 : f32 to vector<8x64xf32>
    %15 = arith.maximumf %13, %14 : vector<8x64xf32>
    %c0_16 = arith.constant 0 : index
    %c0_17 = arith.constant 0 : index
    %16 = vector.load %arg8[%c0_16, %c0_17] : memref<64x64xf32, #tpu.memory_space<vmem>>, vector<64x64xf32>
    %cst_18 = arith.constant dense<0.000000e+00> : vector<8x64xf32>
    %17 = tpu.matmul %15, %16, %cst_18 {dimension_numbers = #tpu.dot_dimension_numbers<[1], [0], [0], [1], [0, 0, 1, 1], [], []>} : vector<8x64xf32>, vector<64x64xf32>, vector<8x64xf32> -> vector<8x64xf32>
    %c0_19 = arith.constant 0 : index
    %c0_20 = arith.constant 0 : index
    %18 = vector.load %arg9[%c0_19, %c0_20] : memref<1x64xf32, #tpu.memory_space<vmem>>, vector<1x64xf32>
    %19 = vector.broadcast %18 : vector<1x64xf32> to vector<8x64xf32>
    %20 = arith.addf %17, %19 : vector<8x64xf32>
    %cst_21 = arith.constant 0.000000e+00 : f32
    %21 = vector.broadcast %cst_21 : f32 to vector<8x64xf32>
    %22 = arith.maximumf %20, %21 : vector<8x64xf32>
    %c0_22 = arith.constant 0 : index
    %c0_23 = arith.constant 0 : index
    %23 = vector.load %arg10[%c0_22, %c0_23] : memref<64x32xf32, #tpu.memory_space<vmem>>, vector<64x32xf32>
    %cst_24 = arith.constant dense<0.000000e+00> : vector<8x32xf32>
    %24 = tpu.matmul %22, %23, %cst_24 {dimension_numbers = #tpu.dot_dimension_numbers<[1], [0], [0], [1], [0, 0, 1, 1], [], []>} : vector<8x64xf32>, vector<64x32xf32>, vector<8x32xf32> -> vector<8x32xf32>
    %c0_25 = arith.constant 0 : index
    %c0_26 = arith.constant 0 : index
    %25 = vector.load %arg11[%c0_25, %c0_26] : memref<1x32xf32, #tpu.memory_space<vmem>>, vector<1x32xf32>
    %26 = vector.broadcast %25 : vector<1x32xf32> to vector<8x32xf32>
    %27 = arith.addf %24, %26 : vector<8x32xf32>
    %cst_27 = arith.constant 0.000000e+00 : f32
    %28 = vector.broadcast %cst_27 : f32 to vector<8x32xf32>
    %29 = arith.maximumf %27, %28 : vector<8x32xf32>
    %c0_28 = arith.constant 0 : index
    %c0_29 = arith.constant 0 : index
    %30 = vector.load %arg12[%c0_28, %c0_29] : memref<32x32xf32, #tpu.memory_space<vmem>>, vector<32x32xf32>
    %cst_30 = arith.constant dense<0.000000e+00> : vector<8x32xf32>
    %31 = tpu.matmul %29, %30, %cst_30 {dimension_numbers = #tpu.dot_dimension_numbers<[1], [0], [0], [1], [0, 0, 1, 1], [], []>} : vector<8x32xf32>, vector<32x32xf32>, vector<8x32xf32> -> vector<8x32xf32>
    %c0_31 = arith.constant 0 : index
    %c0_32 = arith.constant 0 : index
    %32 = vector.load %arg13[%c0_31, %c0_32] : memref<1x32xf32, #tpu.memory_space<vmem>>, vector<1x32xf32>
    %33 = vector.broadcast %32 : vector<1x32xf32> to vector<8x32xf32>
    %34 = arith.addf %31, %33 : vector<8x32xf32>
    %cst_33 = arith.constant 0.000000e+00 : f32
    %35 = vector.broadcast %cst_33 : f32 to vector<8x32xf32>
    %36 = arith.maximumf %34, %35 : vector<8x32xf32>
    %c0_34 = arith.constant 0 : index
    %c0_35 = arith.constant 0 : index
    %37 = vector.load %arg14[%c0_34, %c0_35] : memref<32x16xf32, #tpu.memory_space<vmem>>, vector<32x16xf32>
    %cst_36 = arith.constant dense<0.000000e+00> : vector<8x16xf32>
    %38 = tpu.matmul %36, %37, %cst_36 {dimension_numbers = #tpu.dot_dimension_numbers<[1], [0], [0], [1], [0, 0, 1, 1], [], []>} : vector<8x32xf32>, vector<32x16xf32>, vector<8x16xf32> -> vector<8x16xf32>
    %c0_37 = arith.constant 0 : index
    %c0_38 = arith.constant 0 : index
    %39 = vector.load %arg15[%c0_37, %c0_38] : memref<1x16xf32, #tpu.memory_space<vmem>>, vector<1x16xf32>
    %40 = vector.broadcast %39 : vector<1x16xf32> to vector<8x16xf32>
    %41 = arith.addf %38, %40 : vector<8x16xf32>
    %cst_39 = arith.constant 0.000000e+00 : f32
    %42 = vector.broadcast %cst_39 : f32 to vector<8x16xf32>
    %43 = arith.maximumf %41, %42 : vector<8x16xf32>
    %c0_40 = arith.constant 0 : index
    %c0_41 = arith.constant 0 : index
    %44 = vector.load %arg16[%c0_40, %c0_41] : memref<8x16xf32, #tpu.memory_space<vmem>>, vector<8x16xf32>
    %cst_42 = arith.constant dense<0.000000e+00> : vector<8x8xf32>
    %45 = tpu.matmul %44, %43, %cst_42 {dimension_numbers = #tpu.dot_dimension_numbers<[1], [1], [0], [0], [0, 0, 1, 0], [], []>} : vector<8x16xf32>, vector<8x16xf32>, vector<8x8xf32> -> vector<8x8xf32>
    %c0_43 = arith.constant 0 : index
    %c0_44 = arith.constant 0 : index
    %46 = vector.load %arg17[%c0_43, %c0_44] : memref<8x1xf32, #tpu.memory_space<vmem>>, vector<8x1xf32>
    %47 = vector.broadcast %46 : vector<8x1xf32> to vector<8x8xf32>
    %48 = arith.addf %45, %47 : vector<8x8xf32>
    %cst_45 = arith.constant 5.000000e-01 : f32
    %49 = vector.broadcast %cst_45 : f32 to vector<8x8xf32>
    %50 = arith.mulf %49, %48 : vector<8x8xf32>
    %51 = math.tanh %50 : vector<8x8xf32>
    %cst_46 = arith.constant 1.000000e+00 : f32
    %52 = vector.broadcast %cst_46 : f32 to vector<8x8xf32>
    %53 = arith.addf %51, %52 : vector<8x8xf32>
    %cst_47 = arith.constant 5.000000e-01 : f32
    %54 = vector.broadcast %cst_47 : f32 to vector<8x8xf32>
    %55 = arith.mulf %54, %53 : vector<8x8xf32>
    %c0_48 = arith.constant 0 : index
    %c0_49 = arith.constant 0 : index
    %56 = vector.load %arg18[%c0_48, %c0_49] : memref<8x8xf32, #tpu.memory_space<vmem>>, vector<8x8xf32>
    tpu.vector_store %arg18[%c0_48, %c0_49], %55 {strides = array<i32>} : memref<8x8xf32, #tpu.memory_space<vmem>>, vector<8x8xf32>,
    return
  }
  func.func @transform_0(%arg0: i32) -> (i32, i32) {
    %c0_i32 = arith.constant 0 : i32
    %c0_i32_0 = arith.constant 0 : i32
    return %arg0, %c0_i32 : i32, i32
  }
  func.func @transform_1(%arg0: i32) -> (i32, i32) {
    %c0_i32 = arith.constant 0 : i32
    %c0_i32_0 = arith.constant 0 : i32
    return %arg0, %c0_i32 : i32, i32
  }
  func.func @transform_2(%arg0: i32) -> (i32, i32) {
    %c0_i32 = arith.constant 0 : i32
    %c0_i32_0 = arith.constant 0 : i32
    return %arg0, %c0_i32 : i32, i32
  }
  func.func @transform_3(%arg0: i32) -> (i32, i32) {
    %c0_i32 = arith.constant 0 : i32
    %c0_i32_0 = arith.constant 0 : i32
    %c0_i32_1 = arith.constant 0 : i32
    return %c0_i32, %c0_i32_0 : i32, i32
  }
  func.func @transform_4(%arg0: i32) -> (i32, i32) {
    %c0_i32 = arith.constant 0 : i32
    %c0_i32_0 = arith.constant 0 : i32
    %c0_i32_1 = arith.constant 0 : i32
    return %c0_i32, %c0_i32_0 : i32, i32
  }
  func.func @transform_5(%arg0: i32) -> (i32, i32) {
    %c0_i32 = arith.constant 0 : i32
    %c0_i32_0 = arith.constant 0 : i32
    %c0_i32_1 = arith.constant 0 : i32
    return %c0_i32, %c0_i32_0 : i32, i32
  }
  func.func @transform_6(%arg0: i32) -> (i32, i32) {
    %c0_i32 = arith.constant 0 : i32
    %c0_i32_0 = arith.constant 0 : i32
    %c0_i32_1 = arith.constant 0 : i32
    return %c0_i32, %c0_i32_0 : i32, i32
  }
  func.func @transform_7(%arg0: i32) -> (i32, i32) {
    %c0_i32 = arith.constant 0 : i32
    %c0_i32_0 = arith.constant 0 : i32
    %c0_i32_1 = arith.constant 0 : i32
    return %c0_i32, %c0_i32_0 : i32, i32
  }
  func.func @transform_8(%arg0: i32) -> (i32, i32) {
    %c0_i32 = arith.constant 0 : i32
    %c0_i32_0 = arith.constant 0 : i32
    %c0_i32_1 = arith.constant 0 : i32
    return %c0_i32, %c0_i32_0 : i32, i32
  }
  func.func @transform_9(%arg0: i32) -> (i32, i32) {
    %c0_i32 = arith.constant 0 : i32
    %c0_i32_0 = arith.constant 0 : i32
    %c0_i32_1 = arith.constant 0 : i32
    return %c0_i32, %c0_i32_0 : i32, i32
  }
  func.func @transform_10(%arg0: i32) -> (i32, i32) {
    %c0_i32 = arith.constant 0 : i32
    %c0_i32_0 = arith.constant 0 : i32
    %c0_i32_1 = arith.constant 0 : i32
    return %c0_i32, %c0_i32_0 : i32, i32
  }
  func.func @transform_11(%arg0: i32) -> (i32, i32) {
    %c0_i32 = arith.constant 0 : i32
    %c0_i32_0 = arith.constant 0 : i32
    %c0_i32_1 = arith.constant 0 : i32
    return %c0_i32, %c0_i32_0 : i32, i32
  }
  func.func @transform_12(%arg0: i32) -> (i32, i32) {
    %c0_i32 = arith.constant 0 : i32
    %c0_i32_0 = arith.constant 0 : i32
    %c0_i32_1 = arith.constant 0 : i32
    return %c0_i32, %c0_i32_0 : i32, i32
  }
  func.func @transform_13(%arg0: i32) -> (i32, i32) {
    %c0_i32 = arith.constant 0 : i32
    %c0_i32_0 = arith.constant 0 : i32
    %c0_i32_1 = arith.constant 0 : i32
    return %c0_i32, %c0_i32_0 : i32, i32
  }
  func.func @transform_14(%arg0: i32) -> (i32, i32) {
    %c0_i32 = arith.constant 0 : i32
    %c0_i32_0 = arith.constant 0 : i32
    %c0_i32_1 = arith.constant 0 : i32
    return %c0_i32, %c0_i32_0 : i32, i32
  }
  func.func @transform_15(%arg0: i32) -> (i32, i32) {
    %c0_i32 = arith.constant 0 : i32
    %c0_i32_0 = arith.constant 0 : i32
    %c0_i32_1 = arith.constant 0 : i32
    return %c0_i32, %c0_i32_0 : i32, i32
  }
  func.func @transform_16(%arg0: i32) -> (i32, i32) {
    %c0_i32 = arith.constant 0 : i32
    %c0_i32_0 = arith.constant 0 : i32
    %c0_i32_1 = arith.constant 0 : i32
    return %c0_i32, %c0_i32_0 : i32, i32
  }
  func.func @transform_17(%arg0: i32) -> (i32, i32) {
    %c0_i32 = arith.constant 0 : i32
    %c0_i32_0 = arith.constant 0 : i32
    return %c0_i32, %arg0 : i32, i32
  }
}

</mosaic_0001>

<llo_original>
// kernel: _fused_forward.1
$region0: #{_fused_forward.1}
  #allocation0 [shape = 'u32[]', space=smem, size = 0x4, offset = 0x4, fixed_abs, tag = 'smem constant byte address 0x4 - core index']
  #allocation1 [shape = 'u32[72,128]{1,0:T(1,128)}', space=vmem, size = 0x9000, scoped, tag = 'internal scratch']
  %s0 = inlined_call_operand.vmem [shape: f32[8,32], index: 0, kind: input, shape index: {}]
  %s1 = inlined_call_operand.vmem [shape: f32[8,32], index: 1, kind: input, shape index: {}]
  %s2 = inlined_call_operand.vmem [shape: f32[8,64], index: 2, kind: input, shape index: {}]
  %s3 = inlined_call_operand.vmem [shape: f32[32,64], index: 3, kind: input, shape index: {}]
  %s4 = inlined_call_operand.hbm [shape: f32[32,64], index: 4, kind: input, shape index: {}]
  %s5 = inlined_call_operand.vmem [shape: f32[64,64], index: 5, kind: input, shape index: {}]
  %s6 = inlined_call_operand.vmem [shape: f32[1,64], index: 6, kind: input, shape index: {}]
  %s7 = inlined_call_operand.hbm [shape: f32[64,64], index: 7, kind: input, shape index: {}]
  %s8 = inlined_call_operand.vmem [shape: f32[1,64], index: 8, kind: input, shape index: {}]
  %s9 = inlined_call_operand.vmem [shape: f32[64,32], index: 9, kind: input, shape index: {}]
  %s10 = inlined_call_operand.vmem [shape: f32[1,32], index: 10, kind: input, shape index: {}]
  %s11 = inlined_call_operand.hbm [shape: f32[32,32], index: 11, kind: input, shape index: {}]
  %s12 = inlined_call_operand.vmem [shape: f32[1,32], index: 12, kind: input, shape index: {}]
  %s13 = inlined_call_operand.vmem [shape: f32[32,16], index: 13, kind: input, shape index: {}]
  %s14 = inlined_call_operand.vmem [shape: f32[1,16], index: 14, kind: input, shape index: {}]
  %s15 = inlined_call_operand.vmem [shape: f32[8,16], index: 15, kind: input, shape index: {}]
  %s16 = inlined_call_operand.vmem [shape: f32[8,1], index: 16, kind: input, shape index: {}]
  %s17 = inlined_call_operand.vmem [shape: f32[8,8], index: 17, kind: output, shape index: {}]
  %s18 = sld [smem:[#allocation0]]
  $region90: #{_fused_forward.1} parent=0
    _
  %s20 = ssub.s32 1, %s18
  %s21 = scalar_select 0, %s20, %s18
  $region1: #{_fused_forward.1} parent=0
    #allocation2 [shape = 'u8[16384]{0}', space=vmem, size = 0x4000, scoped, tag = 'input window, operand 4, single buffered']
    #allocation3 [shape = 's32[1]{0}', space=sflag, size = 0x4, scoped, tag = 'scoped memory for _fused_forward.1']
    #allocation4 [shape = 'u8[32768]{0}', space=vmem, size = 0x8000, scoped, tag = 'input window, operand 7, single buffered']
    #allocation5 [shape = 's32[1]{0}', space=sflag, size = 0x4, scoped, tag = 'scoped memory for _fused_forward.1']
    #allocation6 [shape = 'u8[16384]{0}', space=vmem, size = 0x4000, scoped, tag = 'input window, operand 11, single buffered']
    %22 = vsyncpa [#allocation3], 0
    %23 = vsyncpa [#allocation5], 0
    // Predicated region
    $region2: #{_fused_forward.1} parent=1 // pred_check
      _
    $region3: #{_fused_forward.1} parent=1 // pred_check_branch
      %25 = sbr.rel (0) target = $region5
    $region4: #{_fused_forward.1} parent=1 // pred_region
      _
    $region5: #{_fused_forward.1} parent=1 // pred_fallthru
      _
    // Predicated region
    $region6: #{_fused_forward.1} parent=1 // pred_check
      _
    $region7: #{_fused_forward.1} parent=1 // pred_check_branch
      %27 = sbr.rel (0) target = $region9
    $region8: #{_fused_forward.1} parent=1 // pred_region
      _
    $region9: #{_fused_forward.1} parent=1 // pred_fallthru
      _
    // Predicated region
    $region10: #{_fused_forward.1} parent=1 // pred_check
      _
    $region11: #{_fused_forward.1} parent=1 // pred_check_branch
      %29 = sbr.rel (0) target = $region13
    $region12: #{_fused_forward.1} parent=1 // pred_region
      _
    $region13: #{_fused_forward.1} parent=1 // pred_fallthru
      _
    // Predicated region
    $region14: #{_fused_forward.1} parent=1 // pred_check
      _
    $region15: #{_fused_forward.1} parent=1 // pred_check_branch
      %31 = sbr.rel (0) target = $region17
    $region16: #{_fused_forward.1} parent=1 // pred_region
      _
    $region17: #{_fused_forward.1} parent=1 // pred_fallthru
      _
    // Predicated region
    $region18: #{_fused_forward.1} parent=1 // pred_check
      _
    $region19: #{_fused_forward.1} parent=1 // pred_check_branch
      %33 = sbr.rel (0) target = $region21
    $region20: #{_fused_forward.1} parent=1 // pred_region
      %35 = vsyncadd [#allocation3], 0
      %s36 = sshll.u32 %s4, 4
      %s37 = int_to_ptr.hbm [resolvable:$true] %s36
      %s38 = sshll.u32 [#allocation2], 4
      %s39 = int_to_ptr.vmem [resolvable:$true] %s38
      %44 = dma.hbm_to_vmem [thread:$0]  %s37, 512, %s39, [#allocation3], 128, 128, 8
    $region21: #{_fused_forward.1} parent=1 // pred_fallthru
      _
    // Predicated region
    $region22: #{_fused_forward.1} parent=1 // pred_check
      _
    $region23: #{_fused_forward.1} parent=1 // pred_check_branch
      %46 = sbr.rel (0) target = $region25
    $region24: #{_fused_forward.1} parent=1 // pred_region
      _
    $region25: #{_fused_forward.1} parent=1 // pred_fallthru
      _
    // Predicated region
    $region26: #{_fused_forward.1} parent=1 // pred_check
      _
    $region27: #{_fused_forward.1} parent=1 // pred_check_branch
      %48 = sbr.rel (0) target = $region29
    $region28: #{_fused_forward.1} parent=1 // pred_region
      _
    $region29: #{_fused_forward.1} parent=1 // pred_fallthru
      _
    // Predicated region
    $region30: #{_fused_forward.1} parent=1 // pred_check
      _
    $region31: #{_fused_forward.1} parent=1 // pred_check_branch
      %50 = sbr.rel (0) target = $region33
    $region32: #{_fused_forward.1} parent=1 // pred_region
      %52 = vsyncadd [#allocation5], 0
      %s53 = sshll.u32 %s7, 4
      %s54 = int_to_ptr.hbm [resolvable:$true] %s53
      %s55 = sshll.u32 [#allocation4], 4
      %s56 = int_to_ptr.vmem [resolvable:$true] %s55
      %61 = dma.hbm_to_vmem [thread:$0]  %s54, 1024, %s56, [#allocation5], 128, 128, 8
    $region33: #{_fused_forward.1} parent=1 // pred_fallthru
      _
    // Predicated region
    $region34: #{_fused_forward.1} parent=1 // pred_check
      _
    $region35: #{_fused_forward.1} parent=1 // pred_check_branch
      %63 = sbr.rel (0) target = $region37
    $region36: #{_fused_forward.1} parent=1 // pred_region
      _
    $region37: #{_fused_forward.1} parent=1 // pred_fallthru
      _
    // Predicated region
    $region38: #{_fused_forward.1} parent=1 // pred_check
      _
    $region39: #{_fused_forward.1} parent=1 // pred_check_branch
      %65 = sbr.rel (0) target = $region41
    $region40: #{_fused_forward.1} parent=1 // pred_region
      _
    $region41: #{_fused_forward.1} parent=1 // pred_fallthru
      _
    // Predicated region
    $region42: #{_fused_forward.1} parent=1 // pred_check
      _
    $region43: #{_fused_forward.1} parent=1 // pred_check_branch
      %67 = sbr.rel (0) target = $region45
    $region44: #{_fused_forward.1} parent=1 // pred_region
      _
    $region45: #{_fused_forward.1} parent=1 // pred_fallthru
      _
    // Predicated region
    $region46: #{_fused_forward.1} parent=1 // pred_check
      _
    $region47: #{_fused_forward.1} parent=1 // pred_check_branch
      %69 = sbr.rel (0) target = $region49
    $region48: #{_fused_forward.1} parent=1 // pred_region
      %71 = vsyncadd [#allocation5], 0
      %s72 = sshll.u32 %s11, 4
      %s73 = int_to_ptr.hbm [resolvable:$true] %s72
      %s74 = sshll.u32 [#allocation6], 4
      %s75 = int_to_ptr.vmem [resolvable:$true] %s74
      %80 = dma.hbm_to_vmem [thread:$0]  %s73, 512, %s75, [#allocation5], 128, 128, 8
    $region49: #{_fused_forward.1} parent=1 // pred_fallthru
      _
    // Predicated region
    $region50: #{_fused_forward.1} parent=1 // pred_check
      _
    $region51: #{_fused_forward.1} parent=1 // pred_check_branch
      %82 = sbr.rel (0) target = $region53
    $region52: #{_fused_forward.1} parent=1 // pred_region
      _
    $region53: #{_fused_forward.1} parent=1 // pred_fallthru
      _
    // Predicated region
    $region54: #{_fused_forward.1} parent=1 // pred_check
      _
    $region55: #{_fused_forward.1} parent=1 // pred_check_branch
      %84 = sbr.rel (0) target = $region57
    $region56: #{_fused_forward.1} parent=1 // pred_region
      _
    $region57: #{_fused_forward.1} parent=1 // pred_fallthru
      _
    // Predicated region
    $region58: #{_fused_forward.1} parent=1 // pred_check
      _
    $region59: #{_fused_forward.1} parent=1 // pred_check_branch
      %86 = sbr.rel (0) target = $region61
    $region60: #{_fused_forward.1} parent=1 // pred_region
      _
    $region61: #{_fused_forward.1} parent=1 // pred_fallthru
      _
    // Predicated region
    $region62: #{_fused_forward.1} parent=1 // pred_check
      _
    $region63: #{_fused_forward.1} parent=1 // pred_check_branch
      %88 = sbr.rel (0) target = $region65
    $region64: #{_fused_forward.1} parent=1 // pred_region
      _
    $region65: #{_fused_forward.1} parent=1 // pred_fallthru
      _
    // Predicated region
    $region66: #{_fused_forward.1} parent=1 // pred_check
      _
    $region67: #{_fused_forward.1} parent=1 // pred_check_branch
      %90 = sbr.rel (0) target = $region69
    $region68: #{_fused_forward.1} parent=1 // pred_region
      _
    $region69: #{_fused_forward.1} parent=1 // pred_fallthru
      _
    // Predicated region
    $region70: #{_fused_forward.1} parent=1 // pred_check
      _
    $region71: #{_fused_forward.1} parent=1 // pred_check_branch
      %92 = sbr.rel (0) target = $region73
    $region72: #{_fused_forward.1} parent=1 // pred_region
      %94 = dma.done [#allocation3], 512
    $region73: #{_fused_forward.1} parent=1 // pred_fallthru
      _
    // Predicated region
    $region74: #{_fused_forward.1} parent=1 // pred_check
      _
    $region75: #{_fused_forward.1} parent=1 // pred_check_branch
      %96 = sbr.rel (0) target = $region77
    $region76: #{_fused_forward.1} parent=1 // pred_region
      %98 = dma.done [#allocation5], 1024
    $region77: #{_fused_forward.1} parent=1 // pred_fallthru
      _
    // Predicated region
    $region78: #{_fused_forward.1} parent=1 // pred_check
      _
    $region79: #{_fused_forward.1} parent=1 // pred_check_branch
      %100 = sbr.rel (0) target = $region81
    $region80: #{_fused_forward.1} parent=1 // pred_region
      %102 = dma.done [#allocation5], 512
    $region81: #{_fused_forward.1} parent=1 // pred_fallthru
      _
    %v103 = vld [vmem:[%s0] sm:$0xff]
    %v104 = vld [vmem:[%s3] sm:$0xff]
    %v105 = vld [vmem:[%s3 + $0x8] sm:$0xff]
    %v106 = vld [vmem:[%s3 + $0x10] sm:$0xff]
    %v107 = vld [vmem:[%s3 + $0x18] sm:$0xff]
    %v108 = vld [vmem:[%s1] sm:$0xff]
    %v109 = vld [vmem:[#allocation2] sm:$0xff]
    %v110 = vld [vmem:[#allocation2 + $0x8] sm:$0xff]
    %v111 = vld [vmem:[#allocation2 + $0x10] sm:$0xff]
    %v112 = vld [vmem:[#allocation2 + $0x18] sm:$0xff]
    %vm113 = vcmask 261120
    %v115 = vsel %vm113, %v108, 0
    %117 = vmatpush.msra.mxu0 0.0
    %118 = vmatpush.msra.mxu0 0.0
    %119 = vmatpush.msra.mxu0 0.0
    %120 = vmatpush.msra.mxu0 0.0
    %121 = vmatpush.msra.mxu0 0.0
    %122 = vmatpush.msra.mxu0 0.0
    %123 = vmatpush.msra.mxu0 0.0
    %124 = vmatpush.msra.mxu0 0.0
    %125 = vmatpush.msra.mxu0 0.0
    %126 = vmatpush.msra.mxu0 0.0
    %127 = vmatpush.msra.mxu0 0.0
    %128 = vmatpush.msra.mxu0 0.0
    %129 = vmatpush.msra.mxu0 %v112
    %130 = vmatpush.msra.mxu0 %v111
    %131 = vmatpush.msra.mxu0 %v110
    %132 = vmatpush.msra.mxu0 %v109
    %133 = vmatmul.f32.gmra.mxu0 %v115
    %v134 = vpop.f32.mrf.mxu0
    %v135 = vadd.f32 0.0, %v134
    %136 = vdwg.mxu0
    %v138 = vsel %vm113, %v103, 0
    %140 = vmatpush.msra.mxu0 0.0
    %141 = vmatpush.msra.mxu0 0.0
    %142 = vmatpush.msra.mxu0 0.0
    %143 = vmatpush.msra.mxu0 0.0
    %144 = vmatpush.msra.mxu0 0.0
    %145 = vmatpush.msra.mxu0 0.0
    %146 = vmatpush.msra.mxu0 0.0
    %147 = vmatpush.msra.mxu0 0.0
    %148 = vmatpush.msra.mxu0 0.0
    %149 = vmatpush.msra.mxu0 0.0
    %150 = vmatpush.msra.mxu0 0.0
    %151 = vmatpush.msra.mxu0 0.0
    %152 = vmatpush.msra.mxu0 %v107
    %153 = vmatpush.msra.mxu0 %v106
    %154 = vmatpush.msra.mxu0 %v105
    %155 = vmatpush.msra.mxu0 %v104
    %156 = vmatmul.f32.gmra.mxu0 %v138
    %v157 = vpop.f32.mrf.mxu0
    %v158 = vadd.f32 %v135, %v157
    %159 = vdwg.mxu0
    %v160 = vld [vmem:[%s2] sm:$0xff]
    %v161 = vld [vmem:[%s5] sm:$0xff]
    %v162 = vld [vmem:[%s5 + $0x8] sm:$0xff]
    %v163 = vld [vmem:[%s5 + $0x10] sm:$0xff]
    %v164 = vld [vmem:[%s5 + $0x18] sm:$0xff]
    %v165 = vld [vmem:[%s5 + $0x20] sm:$0xff]
    %v166 = vld [vmem:[%s5 + $0x28] sm:$0xff]
    %v167 = vld [vmem:[%s5 + $0x30] sm:$0xff]
    %v168 = vld [vmem:[%s5 + $0x38] sm:$0xff]
    %vm169 = vcmask 523264
    %v171 = vsel %vm169, %v160, 0
    %173 = vmatpush.msra.mxu0 0.0
    %174 = vmatpush.msra.mxu0 0.0
    %175 = vmatpush.msra.mxu0 0.0
    %176 = vmatpush.msra.mxu0 0.0
    %177 = vmatpush.msra.mxu0 0.0
    %178 = vmatpush.msra.mxu0 0.0
    %179 = vmatpush.msra.mxu0 0.0
    %180 = vmatpush.msra.mxu0 0.0
    %181 = vmatpush.msra.mxu0 %v168
    %182 = vmatpush.msra.mxu0 %v167
    %183 = vmatpush.msra.mxu0 %v166
    %184 = vmatpush.msra.mxu0 %v165
    %185 = vmatpush.msra.mxu0 %v164
    %186 = vmatpush.msra.mxu0 %v163
    %187 = vmatpush.msra.mxu0 %v162
    %188 = vmatpush.msra.mxu0 %v161
    %189 = vmatmul.f32.gmra.mxu0 %v171
    %v190 = vpop.f32.mrf.mxu0
    %v191 = vadd.f32 0.0, %v190
    %192 = vdwg.mxu0
    %v193 = vadd.f32 %v158, %v191
    %v194 = vld [vmem:[%s6] sm:$0x1]
    %v196 = vperm.slane %v194, 0
    %v198 = vadd.f32 %v193, %v196
    %v199 = vmax.f32 %v198, 0.0
    %v200 = vld [vmem:[#allocation4] sm:$0xff]
    %v201 = vld [vmem:[#allocation4 + $0x8] sm:$0xff]
    %v202 = vld [vmem:[#allocation4 + $0x10] sm:$0xff]
    %v203 = vld [vmem:[#allocation4 + $0x18] sm:$0xff]
    %v204 = vld [vmem:[#allocation4 + $0x20] sm:$0xff]
    %v205 = vld [vmem:[#allocation4 + $0x28] sm:$0xff]
    %v206 = vld [vmem:[#allocation4 + $0x30] sm:$0xff]
    %v207 = vld [vmem:[#allocation4 + $0x38] sm:$0xff]
    %v208 = vld [vmem:[%s8] sm:$0x1]
    %v210 = vperm.slane %v208, 0
    %v213 = vsel %vm169, %v199, 0
    %215 = vmatpush.msra.mxu0 0.0
    %216 = vmatpush.msra.mxu0 0.0
    %217 = vmatpush.msra.mxu0 0.0
    %218 = vmatpush.msra.mxu0 0.0
    %219 = vmatpush.msra.mxu0 0.0
    %220 = vmatpush.msra.mxu0 0.0
    %221 = vmatpush.msra.mxu0 0.0
    %222 = vmatpush.msra.mxu0 0.0
    %223 = vmatpush.msra.mxu0 %v207
    %224 = vmatpush.msra.mxu0 %v206
    %225 = vmatpush.msra.mxu0 %v205
    %226 = vmatpush.msra.mxu0 %v204
    %227 = vmatpush.msra.mxu0 %v203
    %228 = vmatpush.msra.mxu0 %v202
    %229 = vmatpush.msra.mxu0 %v201
    %230 = vmatpush.msra.mxu0 %v200
    %231 = vmatmul.f32.gmra.mxu0 %v213
    %v232 = vpop.f32.mrf.mxu0
    %v233 = vadd.f32 %v210, %v232
    %234 = vdwg.mxu0
    %v235 = vmax.f32 %v233, 0.0
    %v236 = vld [vmem:[%s9] sm:$0xff]
    %v237 = vld [vmem:[%s9 + $0x8] sm:$0xff]
    %v238 = vld [vmem:[%s9 + $0x10] sm:$0xff]
    %v239 = vld [vmem:[%s9 + $0x18] sm:$0xff]
    %v240 = vld [vmem:[%s9 + $0x20] sm:$0xff]
    %v241 = vld [vmem:[%s9 + $0x28] sm:$0xff]
    %v242 = vld [vmem:[%s9 + $0x30] sm:$0xff]
    %v243 = vld [vmem:[%s9 + $0x38] sm:$0xff]
    %v244 = vld [vmem:[%s10] sm:$0x1]
    %v246 = vperm.slane %v244, 0
    %v249 = vsel %vm169, %v235, 0
    %251 = vmatpush.msra.mxu0 0.0
    %252 = vmatpush.msra.mxu0 0.0
    %253 = vmatpush.msra.mxu0 0.0
    %254 = vmatpush.msra.mxu0 0.0
    %255 = vmatpush.msra.mxu0 0.0
    %256 = vmatpush.msra.mxu0 0.0
    %257 = vmatpush.msra.mxu0 0.0
    %258 = vmatpush.msra.mxu0 0.0
    %259 = vmatpush.msra.mxu0 %v243
    %260 = vmatpush.msra.mxu0 %v242
    %261 = vmatpush.msra.mxu0 %v241
    %262 = vmatpush.msra.mxu0 %v240
    %263 = vmatpush.msra.mxu0 %v239
    %264 = vmatpush.msra.mxu0 %v238
    %265 = vmatpush.msra.mxu0 %v237
    %266 = vmatpush.msra.mxu0 %v236
    %267 = vmatmul.f32.gmra.mxu0 %v249
    %v268 = vpop.f32.mrf.mxu0
    %v269 = vadd.f32 %v246, %v268
    %270 = vdwg.mxu0
    %v271 = vmax.f32 %v269, 0.0
    %v272 = vld [vmem:[#allocation6] sm:$0xff]
    %v273 = vld [vmem:[#allocation6 + $0x8] sm:$0xff]
    %v274 = vld [vmem:[#allocation6 + $0x10] sm:$0xff]
    %v275 = vld [vmem:[#allocation6 + $0x18] sm:$0xff]
    %v276 = vld [vmem:[%s12] sm:$0x1]
    %v278 = vperm.slane %v276, 0
    %v281 = vsel %vm113, %v271, 0
    %283 = vmatpush.msra.mxu0 0.0
    %284 = vmatpush.msra.mxu0 0.0
    %285 = vmatpush.msra.mxu0 0.0
    %286 = vmatpush.msra.mxu0 0.0
    %287 = vmatpush.msra.mxu0 0.0
    %288 = vmatpush.msra.mxu0 0.0
    %289 = vmatpush.msra.mxu0 0.0
    %290 = vmatpush.msra.mxu0 0.0
    %291 = vmatpush.msra.mxu0 0.0
    %292 = vmatpush.msra.mxu0 0.0
    %293 = vmatpush.msra.mxu0 0.0
    %294 = vmatpush.msra.mxu0 0.0
    %295 = vmatpush.msra.mxu0 %v275
    %296 = vmatpush.msra.mxu0 %v274
    %297 = vmatpush.msra.mxu0 %v273
    %298 = vmatpush.msra.mxu0 %v272
    %299 = vmatmul.f32.gmra.mxu0 %v281
    %v300 = vpop.f32.mrf.mxu0
    %v301 = vadd.f32 %v278, %v300
    %302 = vdwg.mxu0
    %v303 = vmax.f32 %v301, 0.0
    %v304 = vld [vmem:[%s13] sm:$0xff]
    %v305 = vld [vmem:[%s13 + $0x8] sm:$0xff]
    %v306 = vld [vmem:[%s13 + $0x10] sm:$0xff]
    %v307 = vld [vmem:[%s13 + $0x18] sm:$0xff]
    %v308 = vld [vmem:[%s14] sm:$0x1]
    %v310 = vperm.slane %v308, 0
    %v313 = vsel %vm113, %v303, 0
    %315 = vmatpush.msra.mxu0 0.0
    %316 = vmatpush.msra.mxu0 0.0
    %317 = vmatpush.msra.mxu0 0.0
    %318 = vmatpush.msra.mxu0 0.0
    %319 = vmatpush.msra.mxu0 0.0
    %320 = vmatpush.msra.mxu0 0.0
    %321 = vmatpush.msra.mxu0 0.0
    %322 = vmatpush.msra.mxu0 0.0
    %323 = vmatpush.msra.mxu0 0.0
    %324 = vmatpush.msra.mxu0 0.0
    %325 = vmatpush.msra.mxu0 0.0
    %326 = vmatpush.msra.mxu0 0.0
    %327 = vmatpush.msra.mxu0 %v307
    %328 = vmatpush.msra.mxu0 %v306
    %329 = vmatpush.msra.mxu0 %v305
    %330 = vmatpush.msra.mxu0 %v304
    %331 = vmatmul.f32.gmra.mxu0 %v313
    %v332 = vpop.f32.mrf.mxu0
    %v333 = vadd.f32 %v310, %v332
    %334 = vdwg.mxu0
    %v335 = vmax.f32 %v333, 0.0
    %v336 = vld [vmem:[%s15] sm:$0xff]
    %v337 = vld [vmem:[%s16] sm:$0xff]
    %339 = vset.pattern.permute.xlu0 0
    %340 = vperm.xlu0 %339, %v337
    %v341 = vpop.permute.xlu0 %340
    %vm343 = vcmask 130048
    %v345 = vsel %vm343, %v336, 0
    %v348 = vsel %vm343, %v335, 0
    %350 = vmatpush.xpose.msra.mxu0 0.0
    %351 = vmatpush.xpose.msra.mxu0 0.0
    %352 = vmatpush.xpose.msra.mxu0 0.0
    %353 = vmatpush.xpose.msra.mxu0 0.0
    %354 = vmatpush.xpose.msra.mxu0 0.0
    %355 = vmatpush.xpose.msra.mxu0 0.0
    %356 = vmatpush.xpose.msra.mxu0 0.0
    %357 = vmatpush.xpose.msra.mxu0 0.0
    %358 = vmatpush.xpose.msra.mxu0 0.0
    %359 = vmatpush.xpose.msra.mxu0 0.0
    %360 = vmatpush.xpose.msra.mxu0 0.0
    %361 = vmatpush.xpose.msra.mxu0 0.0
    %362 = vmatpush.xpose.msra.mxu0 0.0
    %363 = vmatpush.xpose.msra.mxu0 0.0
    %364 = vmatpush.xpose.msra.mxu0 0.0
    %365 = vmatpush.xpose.msra.mxu0 %v348
    %366 = vmatmul.f32.gmra.mxu0 %v345
    %v367 = vpop.f32.mrf.mxu0
    %v368 = vadd.f32 %v341, %v367
    %369 = vdwg.mxu0
    %v370 = vmul.f32 %v368, 0.5
    %v371 = vtanh.pop %v370
    %v372 = vadd.f32 %v371, 1.0
    %v373 = vmul.f32 %v372, 0.5
    %vm374 = vcmask 64512
    %375 = vst.msk [vmem:[%s17] sm:$0xff] %vm374, %v373
    // Predicated region
    $region82: #{_fused_forward.1} parent=1 // pred_check
      _
    $region83: #{_fused_forward.1} parent=1 // pred_check_branch
      %377 = sbr.rel (0) target = $region85
    $region84: #{_fused_forward.1} parent=1 // pred_region
      _
    $region85: #{_fused_forward.1} parent=1 // pred_fallthru
      _
    // Predicated region
    $region86: #{_fused_forward.1} parent=1 // pred_check
      _
    $region87: #{_fused_forward.1} parent=1 // pred_check_branch
      %379 = sbr.rel (0) target = $region89
    $region88: #{_fused_forward.1} parent=1 // pred_region
      _
    $region89: #{_fused_forward.1} parent=1 // pred_fallthru
      _
    %380 = vsyncpa [#allocation3], 1
    %381 = vsyncpa [#allocation5], 1

</llo_original>
